<compile_context>
chip_gen: v5e
topology: v5e:2x2
jax: 0.10.0
libtpu: 0.0.40
codegen_flags: <defaults>
</compile_context>

<pallas_src>
import jax
import jax.numpy as jnp
import numpy as np
from jax.experimental import pallas as pl
from jax.experimental.pallas import tpu as pltpu


# Tiling knobs: contraction depth of the one-hot gather (per-output-element MAC count)
# and the target per-step output block size (bounds double-buffered VMEM use).
_TIME_TILE_CAP = 256
_OUT_BLOCK_BYTES = 2 * 1024 * 1024


def _pick_tile(n, cap, step):
    """Largest multiple of `step` that divides n and is <= cap (n itself if n <= cap)."""
    if n <= cap:
        return n
    c = (cap // step) * step
    while c >= step:
        if n % c == 0:
            return c
        c -= step
    # TODO(synk): pad ragged dims up to a tile multiple instead of falling back to a
    #             full-extent block (only hit when n has no small aligned divisor).
    return n


def _exact_onehot_dot(xv, g_bf16):
    """xv @ G computed exactly on the MXU, where G is a 0/1 one-hot matrix.

    bf16 inputs: one native bf16 pass (exact copy through the one-hot).
    f32  inputs: split into 3 chunks by masking the low 16 mantissa bits twice.  Each
    chunk is a disjoint bit-field of x, hence exactly bf16-representable; chunk * 1.0
    and the f32 accumulation/summation are exact, so the result reconstructs x
    bit-exactly in 3 single-pass bf16 dots (vs. 6 passes for precision=HIGHEST).
    """
    if xv.dtype == jnp.bfloat16:
        return jnp.dot(xv, g_bf16, preferred_element_type=jnp.float32)
    x = xv.astype(jnp.float32)
    mask = jnp.uint32(0xFFFF0000)
    hi = pltpu.bitcast(pltpu.bitcast(x, jnp.uint32) & mask, jnp.float32)
    r1 = x - hi                                   # exact: low 16 mantissa bits of x
    mid = pltpu.bitcast(pltpu.bitcast(r1, jnp.uint32) & mask, jnp.float32)
    lo = r1 - mid                                 # exact: <= 8 significant bits
    acc = jnp.dot(hi.astype(jnp.bfloat16), g_bf16, preferred_element_type=jnp.float32)
    acc = acc + jnp.dot(mid.astype(jnp.bfloat16), g_bf16,
                        preferred_element_type=jnp.float32)
    acc = acc + jnp.dot(lo.astype(jnp.bfloat16), g_bf16,
                        preferred_element_type=jnp.float32)
    return acc


def _upsample_kernel(g_ref, x_ref, o_ref):
    """Nearest-neighbour upsampling tile: o[:, j] = x[:, j // P] (exact copy)."""
    o_ref[...] = _exact_onehot_dot(x_ref[...], g_ref[...]).astype(o_ref.dtype)


def _max_unpool_kernel(g_ref, jmod_ref, toff_ref, x_ref, idx_ref, o_ref):
    """Max-unpooling tile.

    x_ref/idx_ref: (rT, tT); o_ref: (rT, tT*P); g_ref: (tT, tT*P) one-hot (resident);
    jmod_ref: (1, tT*P) = j % P; toff_ref: (1, tT) = local_t * P (both resident).
    """
    tT = x_ref.shape[-1]
    P = o_ref.shape[-1] // tT
    ti = pl.program_id(1)                                  # time-tile index

    # Within-window offsets: w[r, t] = idx[r, t] - t_global * P, in [0, P) for any
    # index produced by MaxPool1d(kernel=stride=P).  Small ints -> exact in bf16.
    w = idx_ref[...] - ti * (tT * P) - toff_ref[...]
    w_bf = w.astype(jnp.float32).astype(jnp.bfloat16)
    w_up = jnp.dot(w_bf, g_ref[...], preferred_element_type=jnp.float32)

    x_up = _exact_onehot_dot(x_ref[...], g_ref[...])       # x_up[:, j] = x[:, j // P]

    # out[:, j] = x[:, j//P] iff idx[:, j//P] == j else 0.
    # TODO(synk): indices pointing outside their own pooling window (only possible
    #             with a hand-crafted `indices` tensor) are dropped, not scattered.
    keep = w_up == jmod_ref[...]
    o_ref[...] = jnp.where(keep, x_up, 0.0).astype(o_ref.dtype)


def unpool1d_forward(x, pool_size, seq_len=None, indices=None):
    """Unpool1d.forward.

    x:       (B, C, T) float32/bfloat16   (channels-first, time last / on lanes)
    indices: optional (B, C, T) int       (flat time positions, as from MaxPool1d)
    Returns (y, seq_len) with y: (B, C, T * pool_size).
    """
    if pool_size < 2:
        return x, seq_len

    P = int(pool_size)
    B, C, T = x.shape
    T_out = T * P
    R = B * C
    itemsize = x.dtype.itemsize

    x2 = x.reshape(R, T)                                   # free leading-dim merge

    # Tile sizes: lane tiles of <=256 (multiple of 128), row tiles sized so the output
    # block is ~2 MiB (double-buffered blocks + resident G stay far below scoped VMEM
    # on v5e/v6e/v7x while each grid step is big enough to amortize ~0.35us overhead).
    tT = _pick_tile(T, _TIME_TILE_CAP, 128)
    r_cap = int(max(8, min(1024, _OUT_BLOCK_BYTES // max(1, tT * P * itemsize))))
    rT = _pick_tile(R, r_cap, 8)
    grid = (R // rT, T // tT)

    # Hoisted per-tile constants (identical for every tile -> constant index_map ->
    # DMA'd once and resident in VMEM for the whole grid).
    tt = np.arange(tT)[:, None]
    jj = np.arange(tT * P)[None, :]
    g = jnp.asarray((jj // P) == tt, dtype=jnp.bfloat16)   # (tT, tT*P) one-hot

    g_spec = pl.BlockSpec((tT, tT * P), lambda r, t: (0, 0))
    x_spec = pl.BlockSpec((rT, tT), lambda r, t: (r, t))
    o_spec = pl.BlockSpec((rT, tT * P), lambda r, t: (r, t))
    out_shape = jax.ShapeDtypeStruct((R, T_out), x.dtype)
    cparams = pltpu.CompilerParams(dimension_semantics=("parallel", "parallel"))

    value_passes = 1 if x.dtype == jnp.bfloat16 else 3
    io_bytes = R * T * itemsize + R * T_out * itemsize

    if indices is None:
        cost = pl.CostEstimate(flops=2 * R * T_out * tT * value_passes,
                               transcendentals=0, bytes_accessed=io_bytes)
        y2 = pl.pallas_call(
            _upsample_kernel,
            out_shape=out_shape,
            grid=grid,
            in_specs=[g_spec, x_spec],
            out_specs=o_spec,
            compiler_params=cparams,
            cost_estimate=cost,
        )(g, x2)
    else:
        idx2 = jnp.asarray(indices).astype(jnp.int32).reshape(R, T)
        jmod = jnp.asarray((np.arange(tT * P) % P)[None, :], dtype=jnp.float32)
        toff = jnp.asarray((np.arange(tT) * P)[None, :], dtype=jnp.int32)
        jmod_spec = pl.BlockSpec((1, tT * P), lambda r, t: (0, 0))
        toff_spec = pl.BlockSpec((1, tT), lambda r, t: (0, 0))
        idx_spec = pl.BlockSpec((rT, tT), lambda r, t: (r, t))
        cost = pl.CostEstimate(flops=2 * R * T_out * tT * (value_passes + 1),
                               transcendentals=0,
                               bytes_accessed=io_bytes + R * T * 4)
        y2 = pl.pallas_call(
            _max_unpool_kernel,
            out_shape=out_shape,
            grid=grid,
            in_specs=[g_spec, jmod_spec, toff_spec, x_spec, idx_spec],
            out_specs=o_spec,
            compiler_params=cparams,
            cost_estimate=cost,
        )(g, jmod, toff, x2, idx2)

    y = y2.reshape(B, C, T_out)                            # free leading-dim split

    # ---- seq_len bookkeeping (host-side numpy, exactly like the torch module) ----
    if seq_len is not None:
        seq_len = np.asarray(seq_len) * pool_size
        seq_len = np.maximum(seq_len, y.shape[-1])
    return y, seq_len


if __name__ == "__main__":
    key = jax.random.PRNGKey(0)
    k1, k2, k3, k4, k5 = jax.random.split(key, 5)

    B, C, T, P = 2, 4, 16, 2
    T_out = T * P

    x = jax.random.normal(k1, (B, C, T), jnp.float32)
    seq_len_in = np.array([16, 12])

    # ---------- branch 0: pool_size < 2 -> identity ----------
    y_id, sl_id = unpool1d_forward(x, 1, seq_len=seq_len_in)
    assert y_id.shape == x.shape
    np.testing.assert_array_equal(np.asarray(y_id), np.asarray(x))
    np.testing.assert_array_equal(np.asarray(sl_id), seq_len_in)

    # ---------- branch 1: indices=None -> nearest upsampling (exact copy) ----------
    y, sl = unpool1d_forward(x, P, seq_len=seq_len_in)
    y = jax.block_until_ready(y)
    np.testing.assert_array_equal(np.asarray(y), np.repeat(np.asarray(x), P, axis=-1))
    assert y.shape == (B, C, T_out), y.shape
    np.testing.assert_array_equal(np.asarray(sl), np.maximum(seq_len_in * P, T_out))

    # ---------- branch 2: indices from MaxPool1d(kernel=stride=P) ----------
    def maxunpool_case(keyv, b, c, t, p):
        t_out = t * p
        x_orig = np.asarray(jax.random.normal(keyv, (b, c, t_out), jnp.float32))
        xw = x_orig.reshape(b, c, t, p)
        within = xw.argmax(axis=-1)                                          # (b,c,t)
        x_pooled = np.take_along_axis(xw, within[..., None], axis=-1)[..., 0]
        indices = (np.arange(t)[None, None, :] * p + within).astype(np.int32)

        y_ref = np.zeros((b, c, t_out), np.float32)
        bb, cc, _ = np.meshgrid(np.arange(b), np.arange(c), np.arange(t), indexing="ij")
        y_ref[bb, cc, indices] = x_pooled                    # MaxUnpool1d reference

        y_out, _ = unpool1d_forward(jnp.asarray(x_pooled), p,
                                    indices=jnp.asarray(indices))
        y_out = jax.block_until_ready(y_out)
        assert y_out.shape == (b, c, t_out), y_out.shape
        np.testing.assert_array_equal(np.asarray(y_out), y_ref)

    maxunpool_case(k2, B, C, T, P)        # small, single tile
    maxunpool_case(k3, B, C, T, 3)        # non-power-of-two pool size
    maxunpool_case(k4, 2, 4, 512, 2)      # multi-step time grid (two 256-lane tiles)

    # ---------- multi-tile upsampling (exercises time grid + resident G reuse) ------
    xl = jax.random.normal(k5, (2, 4, 512), jnp.float32)
    yl, _ = unpool1d_forward(xl, 2)
    yl = jax.block_until_ready(yl)
    np.testing.assert_array_equal(np.asarray(yl), np.repeat(np.asarray(xl), 2, axis=-1))

    print("KERNEL_OK")
</pallas_src>

<mosaic_0001>
module attributes {stable_mosaic.version = 11 : i64} {
  func.func @_upsample_kernel(%arg0: i32, %arg1: i32, %arg2: memref<16x32xbf16, #tpu.memory_space<vmem>>, %arg3: memref<8x16xf32, #tpu.memory_space<vmem>>, %arg4: memref<8x32xf32, #tpu.memory_space<vmem>>) attributes {dimension_semantics = [#tpu.dimension_semantics<parallel>, #tpu.dimension_semantics<parallel>], iteration_bounds = array<i64: 1, 1>, scalar_prefetch = 0 : i64, scratch_operands = 0 : i64, tpu.core_type = #tpu.core_type<tc>, window_params = [{pipeline_mode = #tpu.pipeline_mode<synchronous>, transform_indices = @transform_0, window_bounds = array<i64: 16, 32>}, {transform_indices = @transform_1, window_bounds = array<i64: 8, 16>}, {transform_indices = @transform_2, window_bounds = array<i64: 8, 32>}]} {
    %c0 = arith.constant 0 : index
    %c0_0 = arith.constant 0 : index
    %0 = vector.load %arg3[%c0, %c0_0] : memref<8x16xf32, #tpu.memory_space<vmem>>, vector<8x16xf32>
    %c0_1 = arith.constant 0 : index
    %c0_2 = arith.constant 0 : index
    %1 = vector.load %arg2[%c0_1, %c0_2] : memref<16x32xbf16, #tpu.memory_space<vmem>>, vector<16x32xbf16>
    %2 = tpu.bitcast %0 : vector<8x16xf32> -> vector<8x16xi32>
    %c-65536_i32 = arith.constant -65536 : i32
    %3 = vector.broadcast %c-65536_i32 : i32 to vector<8x16xi32>
    %4 = arith.andi %2, %3 : vector<8x16xi32>
    %5 = tpu.bitcast %4 : vector<8x16xi32> -> vector<8x16xf32>
    %6 = arith.subf %0, %5 : vector<8x16xf32>
    %7 = tpu.bitcast %6 : vector<8x16xf32> -> vector<8x16xi32>
    %c-65536_i32_3 = arith.constant -65536 : i32
    %8 = vector.broadcast %c-65536_i32_3 : i32 to vector<8x16xi32>
    %9 = arith.andi %7, %8 : vector<8x16xi32>
    %10 = tpu.bitcast %9 : vector<8x16xi32> -> vector<8x16xf32>
    %11 = arith.subf %6, %10 : vector<8x16xf32>
    %12 = arith.truncf %5 : vector<8x16xf32> to vector<8x16xbf16>
    %cst = arith.constant dense<0.000000e+00> : vector<8x32xf32>
    %13 = tpu.matmul %12, %1, %cst {dimension_numbers = #tpu.dot_dimension_numbers<[1], [0], [0], [1], [0, 0, 1, 1], [], []>} : vector<8x16xbf16>, vector<16x32xbf16>, vector<8x32xf32> -> vector<8x32xf32>
    %14 = arith.truncf %10 : vector<8x16xf32> to vector<8x16xbf16>
    %cst_4 = arith.constant dense<0.000000e+00> : vector<8x32xf32>
    %15 = tpu.matmul %14, %1, %cst_4 {dimension_numbers = #tpu.dot_dimension_numbers<[1], [0], [0], [1], [0, 0, 1, 1], [], []>} : vector<8x16xbf16>, vector<16x32xbf16>, vector<8x32xf32> -> vector<8x32xf32>
    %16 = arith.addf %13, %15 : vector<8x32xf32>
    %17 = arith.truncf %11 : vector<8x16xf32> to vector<8x16xbf16>
    %cst_5 = arith.constant dense<0.000000e+00> : vector<8x32xf32>
    %18 = tpu.matmul %17, %1, %cst_5 {dimension_numbers = #tpu.dot_dimension_numbers<[1], [0], [0], [1], [0, 0, 1, 1], [], []>} : vector<8x16xbf16>, vector<16x32xbf16>, vector<8x32xf32> -> vector<8x32xf32>
    %19 = arith.addf %16, %18 : vector<8x32xf32>
    %c0_6 = arith.constant 0 : index
    %c0_7 = arith.constant 0 : index
    %20 = vector.load %arg4[%c0_6, %c0_7] : memref<8x32xf32, #tpu.memory_space<vmem>>, vector<8x32xf32>
    tpu.vector_store %arg4[%c0_6, %c0_7], %19 {strides = array<i32>} : memref<8x32xf32, #tpu.memory_space<vmem>>, vector<8x32xf32>,
    return
  }
  func.func @transform_0(%arg0: i32, %arg1: i32) -> (i32, i32) {
    %c0_i32 = arith.constant 0 : i32
    %c0_i32_0 = arith.constant 0 : i32
    %c0_i32_1 = arith.constant 0 : i32
    return %c0_i32, %c0_i32_0 : i32, i32
  }
  func.func @transform_1(%arg0: i32, %arg1: i32) -> (i32, i32) {
    %c0_i32 = arith.constant 0 : i32
    return %arg0, %arg1 : i32, i32
  }
  func.func @transform_2(%arg0: i32, %arg1: i32) -> (i32, i32) {
    %c0_i32 = arith.constant 0 : i32
    return %arg0, %arg1 : i32, i32
  }
}

</mosaic_0001>

<llo_original>
// kernel: tpu_custom_call.1
$region0: #{tpu_custom_call.1}
  #allocation0 [shape = 'u32[]', space=smem, size = 0x4, offset = 0x4, fixed_abs, tag = 'smem constant byte address 0x4 - core index']
  #allocation1 [shape = 'u32[72,128]{1,0:T(1,128)}', space=vmem, size = 0x9000, scoped, tag = 'internal scratch']
  %s0 = inlined_call_operand.hbm [shape: bf16[16,32], index: 0, kind: input, shape index: {}]
  %s1 = inlined_call_operand.hbm [shape: f32[8,16], index: 1, kind: input, shape index: {}]
  %s2 = inlined_call_operand.hbm [shape: f32[8,32], index: 2, kind: output, shape index: {}]
  %s3 = sld [smem:[#allocation0]]
  $region26: #{tpu_custom_call.1} parent=0
    _
  %s5 = ssub.s32 1, %s3
  %s6 = scalar_select 0, %s5, %s3
  $region1: #{tpu_custom_call.1} parent=0
    #allocation2 [shape = 'u8[4096]{0}', space=vmem, size = 0x1000, scoped, tag = 'input window, operand 0, single buffered']
    #allocation3 [shape = 's32[1]{0}', space=sflag, size = 0x4, scoped, tag = 'scoped memory for tpu_custom_call.1']
    #allocation4 [shape = 's32[1]{0}', space=sflag, size = 0x4, scoped, tag = 'scoped memory for tpu_custom_call.1']
    #allocation5 [shape = 'u8[4096]{0}', space=vmem, size = 0x1000, scoped, tag = 'input window, operand 1, single buffered']
    #allocation6 [shape = 's32[1]{0}', space=sflag, size = 0x4, scoped, tag = 'scoped memory for tpu_custom_call.1']
    #allocation7 [shape = 'u8[4096]{0}', space=vmem, size = 0x1000, scoped, tag = 'output window, operand 0, single buffered']
    %7 = vsyncpa [#allocation3], 0
    %8 = vsyncpa [#allocation6], 0
    %9 = vsyncpa [#allocation4], 0
    // Predicated region
    $region2: #{tpu_custom_call.1} parent=1 // pred_check
      _
    $region3: #{tpu_custom_call.1} parent=1 // pred_check_branch
      %11 = sbr.rel (0) target = $region5
    $region4: #{tpu_custom_call.1} parent=1 // pred_region
      %13 = vsyncadd [#allocation3], 0
      %s14 = sshll.u32 %s0, 4
      %s15 = int_to_ptr.hbm [resolvable:$true] %s14
      %s16 = sshll.u32 [#allocation2], 4
      %s17 = int_to_ptr.vmem [resolvable:$true] %s16
      %22 = dma.hbm_to_vmem [thread:$0]  %s15, 128, %s17, [#allocation3], 64, 64, 4
    $region5: #{tpu_custom_call.1} parent=1 // pred_fallthru
      _
    // Predicated region
    $region6: #{tpu_custom_call.1} parent=1 // pred_check
      _
    $region7: #{tpu_custom_call.1} parent=1 // pred_check_branch
      %24 = sbr.rel (0) target = $region9
    $region8: #{tpu_custom_call.1} parent=1 // pred_region
      %26 = vsyncadd [#allocation6], 0
      %s28 = sshll.u32 %s1, 4
      %s29 = int_to_ptr.hbm [resolvable:$true] %s28
      %s30 = sshll.u32 [#allocation5], 4
      %s31 = int_to_ptr.vmem [resolvable:$true] %s30
      %33 = dma.hbm_to_vmem [thread:$0]  %s29, 128, %s31, [#allocation6]
    $region9: #{tpu_custom_call.1} parent=1 // pred_fallthru
      _
    // Predicated region
    $region10: #{tpu_custom_call.1} parent=1 // pred_check
      _
    $region11: #{tpu_custom_call.1} parent=1 // pred_check_branch
      %35 = sbr.rel (0) target = $region13
    $region12: #{tpu_custom_call.1} parent=1 // pred_region
      %37 = dma.done [#allocation3], 128
    $region13: #{tpu_custom_call.1} parent=1 // pred_fallthru
      _
    // Predicated region
    $region14: #{tpu_custom_call.1} parent=1 // pred_check
      _
    $region15: #{tpu_custom_call.1} parent=1 // pred_check_branch
      %39 = sbr.rel (0) target = $region17
    $region16: #{tpu_custom_call.1} parent=1 // pred_region
      %41 = dma.done [#allocation6], 128
    $region17: #{tpu_custom_call.1} parent=1 // pred_fallthru
      _
    %v43 = vld [vmem:[#allocation5] sm:$0xff]
    %v44 = vld [vmem:[#allocation2] sm:$0xf]
    %v45 = vld [vmem:[#allocation2 + $0x4] sm:$0xf]
    %v47 = vand.u32 %v43, 4294901760
    %v49 = vsub.f32 %v43, %v47
    %v51 = vand.u32 %v49, 4294901760
    %v53 = vsub.f32 %v49, %v51
    %v54 = vpack.c.bf16 %v47, %v47
    %v55 = vpack.c.bf16 %v51, %v51
    %v58 = vunpack.c.l.b16 %v44
    %v59 = vunpack.c.l.b16 %v45
    %v60 = vpack.c.b16 %v59, %v58
    %vm62 = vcmask 130048
    %v64 = vsel %vm62, %v55, 0
    %66 = vmatpush.bf16.msra.mxu0 0
    %67 = vmatpush.bf16.msra.mxu0 0
    %68 = vmatpush.bf16.msra.mxu0 0
    %69 = vmatpush.bf16.msra.mxu0 0
    %70 = vmatpush.bf16.msra.mxu0 0
    %71 = vmatpush.bf16.msra.mxu0 0
    %72 = vmatpush.bf16.msra.mxu0 0
    %73 = vmatpush.bf16.msra.mxu0 %v60
    %74 = vmatmul.bf16.gmra.mxu0 %v64
    %v75 = vpop.f32.mrf.mxu0
    %v76 = vadd.f32 0.0, %v75
    %v77 = vpop.f32.mrf.mxu0
    %78 = vdwg.mxu0
    %v80 = vsel %vm62, %v54, 0
    %82 = vmatpush.bf16.msra.mxu0 0
    %83 = vmatpush.bf16.msra.mxu0 0
    %84 = vmatpush.bf16.msra.mxu0 0
    %85 = vmatpush.bf16.msra.mxu0 0
    %86 = vmatpush.bf16.msra.mxu0 0
    %87 = vmatpush.bf16.msra.mxu0 0
    %88 = vmatpush.bf16.msra.mxu0 0
    %89 = vmatpush.bf16.msra.mxu0 %v60
    %90 = vmatmul.bf16.gmra.mxu0 %v80
    %v91 = vpop.f32.mrf.mxu0
    %v92 = vadd.f32 %v76, %v91
    %v93 = vpop.f32.mrf.mxu0
    %94 = vdwg.mxu0
    %v95 = vpack.c.bf16 %v53, %v53
    %v97 = vsel %vm62, %v95, 0
    %99 = vmatpush.bf16.msra.mxu0 0
    %100 = vmatpush.bf16.msra.mxu0 0
    %101 = vmatpush.bf16.msra.mxu0 0
    %102 = vmatpush.bf16.msra.mxu0 0
    %103 = vmatpush.bf16.msra.mxu0 0
    %104 = vmatpush.bf16.msra.mxu0 0
    %105 = vmatpush.bf16.msra.mxu0 0
    %106 = vmatpush.bf16.msra.mxu0 %v60
    %107 = vmatmul.bf16.gmra.mxu0 %v97
    %v108 = vpop.f32.mrf.mxu0
    %v109 = vadd.f32 0.0, %v108
    %v110 = vpop.f32.mrf.mxu0
    %111 = vdwg.mxu0
    %v112 = vadd.f32 %v92, %v109
    %vm113 = vcmask 261120
    %114 = vst.msk [vmem:[#allocation7] sm:$0xff] %vm113, %v112
    // Predicated region
    $region18: #{tpu_custom_call.1} parent=1 // pred_check
      _
    $region19: #{tpu_custom_call.1} parent=1 // pred_check_branch
      %116 = sbr.rel (0) target = $region21
    $region20: #{tpu_custom_call.1} parent=1 // pred_region
      %118 = vsyncadd [#allocation4], 0
      %s120 = sshll.u32 [#allocation7], 4
      %s121 = int_to_ptr.vmem [resolvable:$true] %s120
      %s122 = sshll.u32 %s2, 4
      %s123 = int_to_ptr.hbm [resolvable:$true] %s122
      %125 = dma.vmem_to_hbm [thread:$0]  %s121, 128, %s123, [#allocation4]
    $region21: #{tpu_custom_call.1} parent=1 // pred_fallthru
      _
    // Predicated region
    $region22: #{tpu_custom_call.1} parent=1 // pred_check
      _
    $region23: #{tpu_custom_call.1} parent=1 // pred_check_branch
      %127 = sbr.rel (0) target = $region25
    $region24: #{tpu_custom_call.1} parent=1 // pred_region
      %129 = dma.done [#allocation4], 128
    $region25: #{tpu_custom_call.1} parent=1 // pred_fallthru
      _
    %130 = vsyncpa [#allocation3], 1
    %131 = vsyncpa [#allocation6], 1
    %132 = vsyncpa [#allocation4], 1

</llo_original>
